<compile_context>
chip_gen: v7x
topology: tpu7x:2x2x1
jax: 0.10.0
libtpu: 0.0.40
codegen_flags: <defaults>
</compile_context>

<pallas_src>
import functools

import jax
import jax.numpy as jnp
from jax import lax
from jax.experimental import pallas as pl
from jax.experimental.pallas import tpu as pltpu


def _lda_kernel(x_ref, w_ref, b_ref, y_ref, acc_ref, *,
                flip, d_total, tk, ragged_k):
    """One (row-tile, D-chunk) grid step.

    x_ref  : (TN, TK) VMEM      w_ref : (2, TK) VMEM (row0 = w1', row1 = w2')
    b_ref  : (1,)    SMEM       y_ref : (1, TN) VMEM (lane-dense output slab)
    acc_ref: (1, TN) f32 VMEM scratch (partial-sum accumulator over D chunks)
    """
    k = pl.program_id(1)

    @pl.when(k == 0)
    def _init():
        acc_ref[...] = jnp.zeros_like(acc_ref)

    x = x_ref[...].astype(jnp.float32)               # (TN, TK)
    w1 = w_ref[0:1, :].astype(jnp.float32)           # (1, TK)
    w2 = w_ref[1:2, :].astype(jnp.float32)           # (1, TK)

    # linear1(x/d) + linear2((x/d)**2) without the MXU (1/d folded into w):
    # fused VPU mul/add, then a single lane reduce per row.
    term = x * (w1 + x * w2)                          # (TN, TK)
    if ragged_k:
        # Mask columns past D in the tail chunk (their VMEM contents are
        # unspecified) so they cannot pollute the row sums.
        col = lax.broadcasted_iota(jnp.int32, (1, tk), 1) + k * tk
        term = jnp.where(col < d_total, term, 0.0)
    z = jnp.sum(term, axis=-1)                        # (TN,)
    acc_ref[...] += z[None, :]

    @pl.when(k == pl.num_programs(1) - 1)
    def _finalize():
        zz = acc_ref[...] + b_ref[0]
        y = 1.0 / (1.0 + jnp.exp(zz))                 # matches reference formula
        if flip:                                      # inds < 0 (static)
            y = 1.0 - y
        y_ref[...] = y.astype(y_ref.dtype)


def _round_up(a, b):
    return (a + b - 1) // b * b


def _pick_tiles(N, D, elem_bytes):
    """Byte-targeted (TN, TK) x-tile: ~4 MiB per buffer (8 MiB double-buffered)."""
    target = 4 << 20
    n_up = _round_up(max(N, 1), 128)

    if D * elem_bytes * 128 <= target:
        # Whole feature dim fits even at the 128-row floor: no D tiling.
        tk = D
        tn = (target // (D * elem_bytes)) // 128 * 128
        tn = max(128, min(tn, 32768))                 # cap keeps (1, TN) bufs small
    else:
        # Very wide D: chunk the reduction axis, keep rows at the floor.
        tn = 128
        tk = (target // (tn * elem_bytes)) // 128 * 128
        if tk >= D:                                   # defensive
            tk = D

    # v7x megacore: make sure the "parallel" row axis has >= 2 tiles whenever
    # there is enough work for both TensorCores (neutral on v5e/v6e).
    if n_up >= 2 * 128:
        tn = min(tn, _round_up(pl.cdiv(N, 2), 128))
    tn = min(tn, n_up)
    return tn, tk


def lda_forward(x, w1, b1, w2, b2, *, dims, divide_dims=False, inds=1.0):
    """Pallas implementation of LDA.forward.

    x : [N, D] float32 (bfloat16 also accepted; upcast in-kernel)
    w1, w2 : [D, 1]    (nn.Linear weight transposed to (in, out))
    b1, b2 : [] scalars
    returns [N, 1] float32
    """
    N, D = x.shape
    div = float(dims) if divide_dims else 1.0

    elem = jnp.dtype(x.dtype).itemsize
    TN, TK = _pick_tiles(N, D, elem)
    n_row_tiles = pl.cdiv(N, TN)
    n_k_tiles = pl.cdiv(D, TK)
    ragged_k = (n_k_tiles > 1) and (D % TK != 0)

    # Fold 1/div into the weights: (x/d).w1 + (x/d)^2.w2 == x.(w1/d) + x^2.(w2/d^2),
    # and fold both biases into a single SMEM scalar (only their sum is used).
    w_packed = jnp.concatenate(
        [w1.reshape(1, D) * (1.0 / div),
         w2.reshape(1, D) * (1.0 / (div * div))], axis=0).astype(jnp.float32)
    b_sum = jnp.reshape(b1 + b2, (1,)).astype(jnp.float32)

    kernel = functools.partial(
        _lda_kernel, flip=(inds < 0), d_total=D, tk=TK, ragged_k=ragged_k)

    out = pl.pallas_call(
        kernel,
        out_shape=jax.ShapeDtypeStruct((1, N), jnp.float32),
        grid_spec=pltpu.PrefetchScalarGridSpec(
            num_scalar_prefetch=0,
            grid=(n_row_tiles, n_k_tiles),
            in_specs=[
                pl.BlockSpec((TN, TK), lambda i, k: (i, k)),          # x tile
                pl.BlockSpec((2, TK), lambda i, k: (0, k)),           # weights
                pl.BlockSpec(memory_space=pltpu.MemorySpace.SMEM),    # bias sum
            ],
            out_specs=pl.BlockSpec((1, TN), lambda i, k: (0, i)),     # lane-dense
            scratch_shapes=[pltpu.VMEM((1, TN), jnp.float32)],        # accumulator
        ),
        compiler_params=pltpu.CompilerParams(
            dimension_semantics=("parallel", "arbitrary"),
            vmem_limit_bytes=40 * 1024 * 1024),
    )(x, w_packed, b_sum)

    # (1, N) -> (N, 1) is the same linear layout (free reshape).
    return out.reshape(N, 1)


def lda_forward_ref(x, w1, b1, w2, b2, *, dims, divide_dims=False, inds=1.0):
    div = float(dims) if divide_dims else 1.0
    xd = x / div
    z = xd @ w1 + b1 + (xd * xd) @ w2 + b2
    y = 1.0 / (1.0 + jnp.exp(z))
    if inds < 0:
        y = 1.0 - y
    return y


# TODO(synk): LDA.predict (python-side list post-processing / thresholding) is
# not implemented; only forward() is covered.

if __name__ == "__main__":
    key = jax.random.PRNGKey(0)
    N, D = 8, 32  # batch, dims (small demo shape)

    kx, k1, k2, k3, k4, kx2, kx3, k5, k6, k7, k8 = jax.random.split(key, 11)
    x = jax.random.normal(kx, (N, D), dtype=jnp.float32)

    # Deterministic nn.Linear-style init: U(-1/sqrt(D), 1/sqrt(D))
    bound = 1.0 / (D ** 0.5)
    w1 = jax.random.uniform(k1, (D, 1), jnp.float32, -bound, bound)
    b1 = jax.random.uniform(k2, (), jnp.float32, -bound, bound)
    w2 = jax.random.uniform(k3, (D, 1), jnp.float32, -bound, bound)
    b2 = jax.random.uniform(k4, (), jnp.float32, -bound, bound)

    # 1) Small case, divide_dims=True, inds > 0.
    y = jax.block_until_ready(
        lda_forward(x, w1, b1, w2, b2, dims=D, divide_dims=True, inds=1.0))
    y_ref = lda_forward_ref(x, w1, b1, w2, b2, dims=D, divide_dims=True, inds=1.0)
    assert y.shape == (N, 1)
    assert jnp.allclose(y, y_ref, atol=1e-5, rtol=1e-5), (y, y_ref)

    # 2) inds < 0 branch.
    y_neg = jax.block_until_ready(
        lda_forward(x, w1, b1, w2, b2, dims=D, divide_dims=True, inds=-1.0))
    assert jnp.allclose(y_neg, 1.0 - y_ref, atol=1e-5, rtol=1e-5)

    # 3) Larger ragged batch: multi row-tile pipelined path, no padding copy.
    N2 = 1000
    x2 = jax.random.normal(kx2, (N2, D), dtype=jnp.float32)
    y2 = jax.block_until_ready(
        lda_forward(x2, w1, b1, w2, b2, dims=D, divide_dims=False, inds=1.0))
    y2_ref = lda_forward_ref(x2, w1, b1, w2, b2, dims=D, divide_dims=False,
                             inds=1.0)
    assert y2.shape == (N2, 1)
    assert jnp.allclose(y2, y2_ref, atol=1e-5, rtol=1e-5)

    # 4) Very wide feature dim: exercises the D (reduction) grid axis with a
    #    ragged, masked tail chunk and the VMEM accumulator.
    N3, D3 = 20, 9000
    bound3 = 1.0 / (D3 ** 0.5)
    x3 = jax.random.normal(kx3, (N3, D3), dtype=jnp.float32)
    w13 = jax.random.uniform(k5, (D3, 1), jnp.float32, -bound3, bound3)
    b13 = jax.random.uniform(k6, (), jnp.float32, -bound3, bound3)
    w23 = jax.random.uniform(k7, (D3, 1), jnp.float32, -bound3, bound3)
    b23 = jax.random.uniform(k8, (), jnp.float32, -bound3, bound3)
    y3 = jax.block_until_ready(
        lda_forward(x3, w13, b13, w23, b23, dims=D3, divide_dims=True, inds=1.0))
    y3_ref = lda_forward_ref(x3, w13, b13, w23, b23, dims=D3, divide_dims=True,
                             inds=1.0)
    assert y3.shape == (N3, 1)
    assert jnp.allclose(y3, y3_ref, atol=5e-5, rtol=1e-4)

    print("KERNEL_OK")
</pallas_src>

<mosaic_0001>
module attributes {stable_mosaic.version = 11 : i64} {
  func.func @_lda_kernel(%arg0: i32, %arg1: i32, %arg2: memref<128x32xf32, #tpu.memory_space<vmem>>, %arg3: memref<2x32xf32, #tpu.memory_space<vmem>>, %arg4: memref<1xf32, #tpu.memory_space<smem>>, %arg5: memref<1x128xf32, #tpu.memory_space<vmem>>, %arg6: memref<1x128xf32, #tpu.memory_space<vmem>>) attributes {dimension_semantics = [#tpu.dimension_semantics<parallel>, #tpu.dimension_semantics<arbitrary>], iteration_bounds = array<i64: 1, 1>, scalar_prefetch = 0 : i64, scratch_operands = 1 : i64, tpu.core_type = #tpu.core_type<tc>, window_params = [{transform_indices = @transform_0, window_bounds = array<i64: 128, 32>}, {transform_indices = @transform_1, window_bounds = array<i64: 2, 32>}, {transform_indices = @transform_2, window_bounds = array<i64: 1>}, {transform_indices = @transform_3, window_bounds = array<i64: 1, 128>}]} {
    %c0_i32 = arith.constant 0 : i32
    %0 = arith.cmpi eq, %arg1, %c0_i32 : i32
    %1 = arith.extui %0 : i1 to i32
    %c0_i32_0 = arith.constant 0 : i32
    %2 = arith.cmpi ne, %1, %c0_i32_0 : i32
    scf.if %2 {
      %cst_11 = arith.constant 0.000000e+00 : f32
      %19 = vector.broadcast %cst_11 : f32 to vector<1x128xf32>
      %c0_12 = arith.constant 0 : index
      %c0_13 = arith.constant 0 : index
      %20 = vector.load %arg6[%c0_12, %c0_13] : memref<1x128xf32, #tpu.memory_space<vmem>>, vector<1x128xf32>
      tpu.vector_store %arg6[%c0_12, %c0_13], %19 {strides = array<i32>} : memref<1x128xf32, #tpu.memory_space<vmem>>, vector<1x128xf32>,
    } else {
    }
    %c0 = arith.constant 0 : index
    %c0_1 = arith.constant 0 : index
    %3 = vector.load %arg2[%c0, %c0_1] : memref<128x32xf32, #tpu.memory_space<vmem>>, vector<128x32xf32>
    %c0_2 = arith.constant 0 : index
    %c0_3 = arith.constant 0 : index
    %4 = vector.load %arg3[%c0_2, %c0_3] : memref<2x32xf32, #tpu.memory_space<vmem>>, vector<1x32xf32>
    %c1 = arith.constant 1 : index
    %c0_4 = arith.constant 0 : index
    %5 = vector.load %arg3[%c1, %c0_4] : memref<2x32xf32, #tpu.memory_space<vmem>>, vector<1x32xf32>
    %6 = vector.broadcast %5 : vector<1x32xf32> to vector<128x32xf32>
    %7 = arith.mulf %3, %6 : vector<128x32xf32>
    %8 = vector.broadcast %4 : vector<1x32xf32> to vector<128x32xf32>
    %9 = arith.addf %8, %7 : vector<128x32xf32>
    %10 = arith.mulf %3, %9 : vector<128x32xf32>
    %cst = arith.constant dense<0.000000e+00> : vector<128xf32>
    %11 = vector.multi_reduction <add>, %10, %cst [1] : vector<128x32xf32> to vector<128xf32>
    %c0_5 = arith.constant 0 : index
    %c0_6 = arith.constant 0 : index
    %12 = vector.load %arg6[%c0_5, %c0_6] : memref<1x128xf32, #tpu.memory_space<vmem>>, vector<1x128xf32>
    %13 = vector.shape_cast %11 : vector<128xf32> to vector<1x128xf32>
    %14 = arith.addf %12, %13 : vector<1x128xf32>
    %c0_7 = arith.constant 0 : index
    %c0_8 = arith.constant 0 : index
    %15 = vector.load %arg6[%c0_7, %c0_8] : memref<1x128xf32, #tpu.memory_space<vmem>>, vector<1x128xf32>
    tpu.vector_store %arg6[%c0_7, %c0_8], %14 {strides = array<i32>} : memref<1x128xf32, #tpu.memory_space<vmem>>, vector<1x128xf32>,
    %c0_i32_9 = arith.constant 0 : i32
    %16 = arith.cmpi eq, %arg1, %c0_i32_9 : i32
    %17 = arith.extui %16 : i1 to i32
    %c0_i32_10 = arith.constant 0 : i32
    %18 = arith.cmpi ne, %17, %c0_i32_10 : i32
    scf.if %18 {
      %c0_11 = arith.constant 0 : index
      %c0_12 = arith.constant 0 : index
      %19 = vector.load %arg6[%c0_11, %c0_12] : memref<1x128xf32, #tpu.memory_space<vmem>>, vector<1x128xf32>
      %c0_13 = arith.constant 0 : index
      %20 = memref.load %arg4[%c0_13] : memref<1xf32, #tpu.memory_space<smem>>
      %21 = vector.broadcast %20 : f32 to vector<1x128xf32>
      %22 = arith.addf %19, %21 : vector<1x128xf32>
      %23 = math.exp %22 : vector<1x128xf32>
      %cst_14 = arith.constant 1.000000e+00 : f32
      %24 = vector.broadcast %cst_14 : f32 to vector<1x128xf32>
      %25 = arith.addf %24, %23 : vector<1x128xf32>
      %cst_15 = arith.constant 1.000000e+00 : f32
      %26 = vector.broadcast %cst_15 : f32 to vector<1x128xf32>
      %27 = arith.divf %26, %25 : vector<1x128xf32>
      %c0_16 = arith.constant 0 : index
      %c0_17 = arith.constant 0 : index
      %28 = vector.load %arg5[%c0_16, %c0_17] : memref<1x128xf32, #tpu.memory_space<vmem>>, vector<1x128xf32>
      tpu.vector_store %arg5[%c0_16, %c0_17], %27 {strides = array<i32>} : memref<1x128xf32, #tpu.memory_space<vmem>>, vector<1x128xf32>,
    } else {
    }
    return
  }
  func.func @transform_0(%arg0: i32, %arg1: i32) -> (i32, i32) {
    %c0_i32 = arith.constant 0 : i32
    return %arg0, %arg1 : i32, i32
  }
  func.func @transform_1(%arg0: i32, %arg1: i32) -> (i32, i32) {
    %c0_i32 = arith.constant 0 : i32
    %c0_i32_0 = arith.constant 0 : i32
    return %c0_i32, %arg1 : i32, i32
  }
  func.func @transform_2(%arg0: i32, %arg1: i32) -> i32 {
    %c0_i32 = arith.constant 0 : i32
    %c0_i32_0 = arith.constant 0 : i32
    return %c0_i32 : i32
  }
  func.func @transform_3(%arg0: i32, %arg1: i32) -> (i32, i32) {
    %c0_i32 = arith.constant 0 : i32
    %c0_i32_0 = arith.constant 0 : i32
    return %c0_i32, %arg0 : i32, i32
  }
}

</mosaic_0001>

<llo_original>
// kernel: tpu_custom_call.1
$region0: #{tpu_custom_call.1}
  #allocation0 [shape = 'u32[]', space=smem, size = 0x4, offset = 0x4, fixed_abs, tag = 'smem constant byte address 0x4 - core index']
  #allocation1 [shape = 'u32[144,128]{1,0:T(1,128)}', space=vmem, size = 0x12000, scoped, tag = 'internal scratch']
  #allocation2 [shape = 'f32[1,128]{1,0:T(1,128)}', space=vmem, size = 0x200, scoped, tag = 'scratch operand']
  #allocation3 [shape = 'f32[1]{0:T(128)S(6)}', space=smem, size = 0x200, scoped, tag = 'scoped memory for tpu_custom_call.1']
  %s0 = inlined_call_operand.hbm [shape: f32[8,32], index: 0, kind: input, shape index: {}]
  %s1 = inlined_call_operand.vmem [shape: f32[2,32], index: 1, kind: input, shape index: {}]
  %s2 = inlined_call_operand.<no memory space> [shape: f32[1], index: 2, kind: input, shape index: {}]
  %s3 = inlined_call_operand.hbm [shape: f32[1,8], index: 3, kind: output, shape index: {}]
  %s4 = sld [smem:[#allocation0]]
  $region34: #{tpu_custom_call.1} parent=0
    _
  %s6 = ssub.s32 1, %s4
  %s7 = scalar_select 0, %s6, %s4
  %8 = sst [smem:[#allocation3]] %s2
  $region1: #{tpu_custom_call.1} parent=0
    #allocation4 [shape = 'u8[65536]{0}', space=vmem, size = 0x10000, scoped, tag = 'input window, operand 0, single buffered']
    #allocation5 [shape = 's32[1]{0}', space=sflag, size = 0x4, scoped, tag = 'scoped memory for tpu_custom_call.1']
    #allocation6 [shape = 's32[1]{0}', space=sflag, size = 0x4, scoped, tag = 'scoped memory for tpu_custom_call.1']
    #allocation7 [shape = 'u8[512]{0}', space=vmem, size = 0x400, scoped, tag = 'output window, operand 0, single buffered']
    %9 = vsyncpa [#allocation5], 0
    %10 = vsyncpa [#allocation6], 0
    // Predicated region
    $region2: #{tpu_custom_call.1} parent=1 // pred_check
      _
    $region3: #{tpu_custom_call.1} parent=1 // pred_check_branch
      %12 = sbr.rel (0) target = $region5
    $region4: #{tpu_custom_call.1} parent=1 // pred_region
      %s14 = ssub.s32 2048, 128
      %15 = vsyncadd [#allocation5], %s14
      %s16 = sshll.u32 [#allocation4], 4
      %s17 = int_to_ptr.vmem [resolvable:$true] %s16
      %22 = dma.hbm_to_vmem [thread:$0]  %s0, 128, %s17, [#allocation5], 128, 128, 8
    $region5: #{tpu_custom_call.1} parent=1 // pred_fallthru
      _
    // Predicated region
    $region6: #{tpu_custom_call.1} parent=1 // pred_check
      _
    $region7: #{tpu_custom_call.1} parent=1 // pred_check_branch
      %24 = sbr.rel (0) target = $region9
    $region8: #{tpu_custom_call.1} parent=1 // pred_region
      _
    $region9: #{tpu_custom_call.1} parent=1 // pred_fallthru
      _
    // Predicated region
    $region10: #{tpu_custom_call.1} parent=1 // pred_check
      _
    $region11: #{tpu_custom_call.1} parent=1 // pred_check_branch
      %26 = sbr.rel (0) target = $region13
    $region12: #{tpu_custom_call.1} parent=1 // pred_region
      _
    $region13: #{tpu_custom_call.1} parent=1 // pred_fallthru
      _
    // Predicated region
    $region14: #{tpu_custom_call.1} parent=1 // pred_check
      _
    $region15: #{tpu_custom_call.1} parent=1 // pred_check_branch
      %28 = sbr.rel (0) target = $region17
    $region16: #{tpu_custom_call.1} parent=1 // pred_region
      %29 = dma.done [#allocation5], 2048
    $region17: #{tpu_custom_call.1} parent=1 // pred_fallthru
      _
    %p30 = scmp.eq.s32.totalorder 0, 0
    // Predicated region
    $region18: #{tpu_custom_call.1} parent=1 // pred_check
      %p31 = pneg %p30
    $region19: #{tpu_custom_call.1} parent=1 // pred_check_branch
      %33 = sbr.rel (%p31) target = $region21
    $region20: #{tpu_custom_call.1} parent=1 // pred_region
      %34 = vst [vmem:[#allocation2] sm:$0x1] 0.0
    $region21: #{tpu_custom_call.1} parent=1 // pred_fallthru
      _
    %v35 = vld [vmem:[#allocation4] sm:$0xff]
    %v36 = vld [vmem:[#allocation4 + $0x8] sm:$0xff]
    %v37 = vld [vmem:[#allocation4 + $0x10] sm:$0xff]
    %v38 = vld [vmem:[#allocation4 + $0x18] sm:$0xff]
    %v39 = vld [vmem:[#allocation4 + $0x20] sm:$0xff]
    %v40 = vld [vmem:[#allocation4 + $0x28] sm:$0xff]
    %v41 = vld [vmem:[#allocation4 + $0x30] sm:$0xff]
    %v42 = vld [vmem:[#allocation4 + $0x38] sm:$0xff]
    %v43 = vld [vmem:[#allocation4 + $0x40] sm:$0xff]
    %v44 = vld [vmem:[#allocation4 + $0x48] sm:$0xff]
    %v45 = vld [vmem:[#allocation4 + $0x50] sm:$0xff]
    %v46 = vld [vmem:[#allocation4 + $0x58] sm:$0xff]
    %v47 = vld [vmem:[#allocation4 + $0x60] sm:$0xff]
    %v48 = vld [vmem:[#allocation4 + $0x68] sm:$0xff]
    %v49 = vld [vmem:[#allocation4 + $0x70] sm:$0xff]
    %v50 = vld [vmem:[#allocation4 + $0x78] sm:$0xff]
    %v51 = vld [vmem:[%s1] sm:$0x1]
    %v52 = vld [vmem:[%s1 + $0x1] sm:$0x1]
    %v53 = vlaneseq
    %v54 = vshrl.u32 %v53, 7
    %v55 = vsub.s32 0, %v54
    %v56 = vrot.slane %v52, %v55
    %v57 = vmul.f32 %v35, %v56
    %v58 = vmul.f32 %v36, %v56
    %v59 = vmul.f32 %v37, %v56
    %v60 = vmul.f32 %v38, %v56
    %v61 = vmul.f32 %v39, %v56
    %v62 = vmul.f32 %v40, %v56
    %v63 = vmul.f32 %v41, %v56
    %v64 = vmul.f32 %v42, %v56
    %v65 = vmul.f32 %v43, %v56
    %v66 = vmul.f32 %v44, %v56
    %v67 = vmul.f32 %v45, %v56
    %v68 = vmul.f32 %v46, %v56
    %v69 = vmul.f32 %v47, %v56
    %v70 = vmul.f32 %v48, %v56
    %v71 = vmul.f32 %v49, %v56
    %v72 = vmul.f32 %v50, %v56
    %v73 = vlaneseq
    %v74 = vshrl.u32 %v73, 7
    %v75 = vsub.s32 0, %v74
    %v76 = vrot.slane %v51, %v75
    %v77 = vadd.f32 %v76, %v57
    %v78 = vadd.f32 %v76, %v58
    %v79 = vadd.f32 %v76, %v59
    %v80 = vadd.f32 %v76, %v60
    %v81 = vadd.f32 %v76, %v61
    %v82 = vadd.f32 %v76, %v62
    %v83 = vadd.f32 %v76, %v63
    %v84 = vadd.f32 %v76, %v64
    %v85 = vadd.f32 %v76, %v65
    %v86 = vadd.f32 %v76, %v66
    %v87 = vadd.f32 %v76, %v67
    %v88 = vadd.f32 %v76, %v68
    %v89 = vadd.f32 %v76, %v69
    %v90 = vadd.f32 %v76, %v70
    %v91 = vadd.f32 %v76, %v71
    %v92 = vadd.f32 %v76, %v72
    %v93 = vmul.f32 %v35, %v77
    %v94 = vmul.f32 %v36, %v78
    %v95 = vmul.f32 %v37, %v79
    %v96 = vmul.f32 %v38, %v80
    %v97 = vmul.f32 %v39, %v81
    %v98 = vmul.f32 %v40, %v82
    %v99 = vmul.f32 %v41, %v83
    %v100 = vmul.f32 %v42, %v84
    %v101 = vmul.f32 %v43, %v85
    %v102 = vmul.f32 %v44, %v86
    %v103 = vmul.f32 %v45, %v87
    %v104 = vmul.f32 %v46, %v88
    %v105 = vmul.f32 %v47, %v89
    %v106 = vmul.f32 %v48, %v90
    %v107 = vmul.f32 %v49, %v91
    %v108 = vmul.f32 %v50, %v92
    %vm109 = vcmask 261120
    %v110 = vsel %vm109, %v93, 0.0
    %111 = vadd.xlane.f32.xlu0 %v110
    %v112 = vpop.xlane.xlu0 %111
    %v113 = vsel %vm109, %v94, 0.0
    %114 = vadd.xlane.f32.xlu0 %v113
    %v115 = vpop.xlane.xlu0 %114
    %v116 = vsel %vm109, %v95, 0.0
    %117 = vadd.xlane.f32.xlu0 %v116
    %v118 = vpop.xlane.xlu0 %117
    %v119 = vsel %vm109, %v96, 0.0
    %120 = vadd.xlane.f32.xlu0 %v119
    %v121 = vpop.xlane.xlu0 %120
    %v122 = vsel %vm109, %v97, 0.0
    %123 = vadd.xlane.f32.xlu0 %v122
    %v124 = vpop.xlane.xlu0 %123
    %v125 = vsel %vm109, %v98, 0.0
    %126 = vadd.xlane.f32.xlu0 %v125
    %v127 = vpop.xlane.xlu0 %126
    %v128 = vsel %vm109, %v99, 0.0
    %129 = vadd.xlane.f32.xlu0 %v128
    %v130 = vpop.xlane.xlu0 %129
    %v131 = vsel %vm109, %v100, 0.0
    %132 = vadd.xlane.f32.xlu0 %v131
    %v133 = vpop.xlane.xlu0 %132
    %v134 = vsel %vm109, %v101, 0.0
    %135 = vadd.xlane.f32.xlu0 %v134
    %v136 = vpop.xlane.xlu0 %135
    %v137 = vsel %vm109, %v102, 0.0
    %138 = vadd.xlane.f32.xlu0 %v137
    %v139 = vpop.xlane.xlu0 %138
    %v140 = vsel %vm109, %v103, 0.0
    %141 = vadd.xlane.f32.xlu0 %v140
    %v142 = vpop.xlane.xlu0 %141
    %v143 = vsel %vm109, %v104, 0.0
    %144 = vadd.xlane.f32.xlu0 %v143
    %v145 = vpop.xlane.xlu0 %144
    %v146 = vsel %vm109, %v105, 0.0
    %147 = vadd.xlane.f32.xlu0 %v146
    %v148 = vpop.xlane.xlu0 %147
    %v149 = vsel %vm109, %v106, 0.0
    %150 = vadd.xlane.f32.xlu0 %v149
    %v151 = vpop.xlane.xlu0 %150
    %v152 = vsel %vm109, %v107, 0.0
    %153 = vadd.xlane.f32.xlu0 %v152
    %v154 = vpop.xlane.xlu0 %153
    %v155 = vsel %vm109, %v108, 0.0
    %156 = vadd.xlane.f32.xlu0 %v155
    %v157 = vpop.xlane.xlu0 %156
    %v158 = vld [vmem:[#allocation2] sm:$0x1]
    %v175 = vlaneseq
    %v176 = vshrl.u32 %v175, 7
    %v177 = vsub.s32 0, %v176
    %v178 = vrot.slane %v112, %v177
    %v179 = vlaneseq
    %v180 = vshrl.u32 %v179, 7
    %v181 = vsub.s32 1, %v180
    %v182 = vrot.slane %v112, %v181
    %v183 = vlaneseq
    %v184 = vshrl.u32 %v183, 7
    %v185 = vsub.s32 2, %v184
    %v186 = vrot.slane %v112, %v185
    %v187 = vlaneseq
    %v188 = vshrl.u32 %v187, 7
    %v189 = vsub.s32 3, %v188
    %v190 = vrot.slane %v112, %v189
    %v191 = vlaneseq
    %v192 = vshrl.u32 %v191, 7
    %v193 = vsub.s32 4, %v192
    %v194 = vrot.slane %v112, %v193
    %v195 = vlaneseq
    %v196 = vshrl.u32 %v195, 7
    %v197 = vsub.s32 5, %v196
    %v198 = vrot.slane %v112, %v197
    %v199 = vlaneseq
    %v200 = vshrl.u32 %v199, 7
    %v201 = vsub.s32 6, %v200
    %v202 = vrot.slane %v112, %v201
    %v203 = vlaneseq
    %v204 = vshrl.u32 %v203, 7
    %v205 = vsub.s32 7, %v204
    %v206 = vrot.slane %v112, %v205
    %v207 = vlaneseq
    %v208 = vshrl.u32 %v207, 7
    %v209 = vsub.s32 0, %v208
    %v210 = vrot.slane %v115, %v209
    %v211 = vlaneseq
    %v212 = vshrl.u32 %v211, 7
    %v213 = vsub.s32 1, %v212
    %v214 = vrot.slane %v115, %v213
    %v215 = vlaneseq
    %v216 = vshrl.u32 %v215, 7
    %v217 = vsub.s32 2, %v216
    %v218 = vrot.slane %v115, %v217
    %v219 = vlaneseq
    %v220 = vshrl.u32 %v219, 7
    %v221 = vsub.s32 3, %v220
    %v222 = vrot.slane %v115, %v221
    %v223 = vlaneseq
    %v224 = vshrl.u32 %v223, 7
    %v225 = vsub.s32 4, %v224
    %v226 = vrot.slane %v115, %v225
    %v227 = vlaneseq
    %v228 = vshrl.u32 %v227, 7
    %v229 = vsub.s32 5, %v228
    %v230 = vrot.slane %v115, %v229
    %v231 = vlaneseq
    %v232 = vshrl.u32 %v231, 7
    %v233 = vsub.s32 6, %v232
    %v234 = vrot.slane %v115, %v233
    %v235 = vlaneseq
    %v236 = vshrl.u32 %v235, 7
    %v237 = vsub.s32 7, %v236
    %v238 = vrot.slane %v115, %v237
    %v239 = vlaneseq
    %v240 = vshrl.u32 %v239, 7
    %v241 = vsub.s32 0, %v240
    %v242 = vrot.slane %v118, %v241
    %v243 = vlaneseq
    %v244 = vshrl.u32 %v243, 7
    %v245 = vsub.s32 1, %v244
    %v246 = vrot.slane %v118, %v245
    %v247 = vlaneseq
    %v248 = vshrl.u32 %v247, 7
    %v249 = vsub.s32 2, %v248
    %v250 = vrot.slane %v118, %v249
    %v251 = vlaneseq
    %v252 = vshrl.u32 %v251, 7
    %v253 = vsub.s32 3, %v252
    %v254 = vrot.slane %v118, %v253
    %v255 = vlaneseq
    %v256 = vshrl.u32 %v255, 7
    %v257 = vsub.s32 4, %v256
    %v258 = vrot.slane %v118, %v257
    %v259 = vlaneseq
    %v260 = vshrl.u32 %v259, 7
    %v261 = vsub.s32 5, %v260
    %v262 = vrot.slane %v118, %v261
    %v263 = vlaneseq
    %v264 = vshrl.u32 %v263, 7
    %v265 = vsub.s32 6, %v264
    %v266 = vrot.slane %v118, %v265
    %v267 = vlaneseq
    %v268 = vshrl.u32 %v267, 7
    %v269 = vsub.s32 7, %v268
    %v270 = vrot.slane %v118, %v269
    %v271 = vlaneseq
    %v272 = vshrl.u32 %v271, 7
    %v273 = vsub.s32 0, %v272
    %v274 = vrot.slane %v121, %v273
    %v275 = vlaneseq
    %v276 = vshrl.u32 %v275, 7
    %v277 = vsub.s32 1, %v276
    %v278 = vrot.slane %v121, %v277
    %v279 = vlaneseq
    %v280 = vshrl.u32 %v279, 7
    %v281 = vsub.s32 2, %v280
    %v282 = vrot.slane %v121, %v281
    %v283 = vlaneseq
    %v284 = vshrl.u32 %v283, 7
    %v285 = vsub.s32 3, %v284
    %v286 = vrot.slane %v121, %v285
    %v287 = vlaneseq
    %v288 = vshrl.u32 %v287, 7
    %v289 = vsub.s32 4, %v288
    %v290 = vrot.slane %v121, %v289
    %v291 = vlaneseq
    %v292 = vshrl.u32 %v291, 7
    %v293 = vsub.s32 5, %v292
    %v294 = vrot.slane %v121, %v293
    %v295 = vlaneseq
    %v296 = vshrl.u32 %v295, 7
    %v297 = vsub.s32 6, %v296
    %v298 = vrot.slane %v121, %v297
    %v299 = vlaneseq
    %v300 = vshrl.u32 %v299, 7
    %v301 = vsub.s32 7, %v300
    %v302 = vrot.slane %v121, %v301
    %v303 = vlaneseq
    %v304 = vshrl.u32 %v303, 7
    %v305 = vsub.s32 0, %v304
    %v306 = vrot.slane %v124, %v305
    %v307 = vlaneseq
    %v308 = vshrl.u32 %v307, 7
    %v309 = vsub.s32 1, %v308
    %v310 = vrot.slane %v124, %v309
    %v311 = vlaneseq
    %v312 = vshrl.u32 %v311, 7
    %v313 = vsub.s32 2, %v312
    %v314 = vrot.slane %v124, %v313
    %v315 = vlaneseq
    %v316 = vshrl.u32 %v315, 7
    %v317 = vsub.s32 3, %v316
    %v318 = vrot.slane %v124, %v317
    %v319 = vlaneseq
    %v320 = vshrl.u32 %v319, 7
    %v321 = vsub.s32 4, %v320
    %v322 = vrot.slane %v124, %v321
    %v323 = vlaneseq
    %v324 = vshrl.u32 %v323, 7
    %v325 = vsub.s32 5, %v324
    %v326 = vrot.slane %v124, %v325
    %v327 = vlaneseq
    %v328 = vshrl.u32 %v327, 7
    %v329 = vsub.s32 6, %v328
    %v330 = vrot.slane %v124, %v329
    %v331 = vlaneseq
    %v332 = vshrl.u32 %v331, 7
    %v333 = vsub.s32 7, %v332
    %v334 = vrot.slane %v124, %v333
    %v335 = vlaneseq
    %v336 = vshrl.u32 %v335, 7
    %v337 = vsub.s32 0, %v336
    %v338 = vrot.slane %v127, %v337
    %v339 = vlaneseq
    %v340 = vshrl.u32 %v339, 7
    %v341 = vsub.s32 1, %v340
    %v342 = vrot.slane %v127, %v341
    %v343 = vlaneseq
    %v344 = vshrl.u32 %v343, 7
    %v345 = vsub.s32 2, %v344
    %v346 = vrot.slane %v127, %v345
    %v347 = vlaneseq
    %v348 = vshrl.u32 %v347, 7
    %v349 = vsub.s32 3, %v348
    %v350 = vrot.slane %v127, %v349
    %v351 = vlaneseq
    %v352 = vshrl.u32 %v351, 7
    %v353 = vsub.s32 4, %v352
    %v354 = vrot.slane %v127, %v353
    %v355 = vlaneseq
    %v356 = vshrl.u32 %v355, 7
    %v357 = vsub.s32 5, %v356
    %v358 = vrot.slane %v127, %v357
    %v359 = vlaneseq
    %v360 = vshrl.u32 %v359, 7
    %v361 = vsub.s32 6, %v360
    %v362 = vrot.slane %v127, %v361
    %v363 = vlaneseq
    %v364 = vshrl.u32 %v363, 7
    %v365 = vsub.s32 7, %v364
    %v366 = vrot.slane %v127, %v365
    %v367 = vlaneseq
    %v368 = vshrl.u32 %v367, 7
    %v369 = vsub.s32 0, %v368
    %v370 = vrot.slane %v130, %v369
    %v371 = vlaneseq
    %v372 = vshrl.u32 %v371, 7
    %v373 = vsub.s32 1, %v372
    %v374 = vrot.slane %v130, %v373
    %v375 = vlaneseq
    %v376 = vshrl.u32 %v375, 7
    %v377 = vsub.s32 2, %v376
    %v378 = vrot.slane %v130, %v377
    %v379 = vlaneseq
    %v380 = vshrl.u32 %v379, 7
    %v381 = vsub.s32 3, %v380
    %v382 = vrot.slane %v130, %v381
    %v383 = vlaneseq
    %v384 = vshrl.u32 %v383, 7
    %v385 = vsub.s32 4, %v384
    %v386 = vrot.slane %v130, %v385
    %v387 = vlaneseq
    %v388 = vshrl.u32 %v387, 7
    %v389 = vsub.s32 5, %v388
    %v390 = vrot.slane %v130, %v389
    %v391 = vlaneseq
    %v392 = vshrl.u32 %v391, 7
    %v393 = vsub.s32 6, %v392
    %v394 = vrot.slane %v130, %v393
    %v395 = vlaneseq
    %v396 = vshrl.u32 %v395, 7
    %v397 = vsub.s32 7, %v396
    %v398 = vrot.slane %v130, %v397
    %v399 = vlaneseq
    %v400 = vshrl.u32 %v399, 7
    %v401 = vsub.s32 0, %v400
    %v402 = vrot.slane %v133, %v401
    %v403 = vlaneseq
    %v404 = vshrl.u32 %v403, 7
    %v405 = vsub.s32 1, %v404
    %v406 = vrot.slane %v133, %v405
    %v407 = vlaneseq
    %v408 = vshrl.u32 %v407, 7
    %v409 = vsub.s32 2, %v408
    %v410 = vrot.slane %v133, %v409
    %v411 = vlaneseq
    %v412 = vshrl.u32 %v411, 7
    %v413 = vsub.s32 3, %v412
    %v414 = vrot.slane %v133, %v413
    %v415 = vlaneseq
    %v416 = vshrl.u32 %v415, 7
    %v417 = vsub.s32 4, %v416
    %v418 = vrot.slane %v133, %v417
    %v419 = vlaneseq
    %v420 = vshrl.u32 %v419, 7
    %v421 = vsub.s32 5, %v420
    %v422 = vrot.slane %v133, %v421
    %v423 = vlaneseq
    %v424 = vshrl.u32 %v423, 7
    %v425 = vsub.s32 6, %v424
    %v426 = vrot.slane %v133, %v425
    %v427 = vlaneseq
    %v428 = vshrl.u32 %v427, 7
    %v429 = vsub.s32 7, %v428
    %v430 = vrot.slane %v133, %v429
    %v431 = vlaneseq
    %v432 = vshrl.u32 %v431, 7
    %v433 = vsub.s32 0, %v432
    %v434 = vrot.slane %v136, %v433
    %v435 = vlaneseq
    %v436 = vshrl.u32 %v435, 7
    %v437 = vsub.s32 1, %v436
    %v438 = vrot.slane %v136, %v437
    %v439 = vlaneseq
    %v440 = vshrl.u32 %v439, 7
    %v441 = vsub.s32 2, %v440
    %v442 = vrot.slane %v136, %v441
    %v443 = vlaneseq
    %v444 = vshrl.u32 %v443, 7
    %v445 = vsub.s32 3, %v444
    %v446 = vrot.slane %v136, %v445
    %v447 = vlaneseq
    %v448 = vshrl.u32 %v447, 7
    %v449 = vsub.s32 4, %v448
    %v450 = vrot.slane %v136, %v449
    %v451 = vlaneseq
    %v452 = vshrl.u32 %v451, 7
    %v453 = vsub.s32 5, %v452
    %v454 = vrot.slane %v136, %v453
    %v455 = vlaneseq
    %v456 = vshrl.u32 %v455, 7
    %v457 = vsub.s32 6, %v456
    %v458 = vrot.slane %v136, %v457
    %v459 = vlaneseq
    %v460 = vshrl.u32 %v459, 7
    %v461 = vsub.s32 7, %v460
    %v462 = vrot.slane %v136, %v461
    %v463 = vlaneseq
    %v464 = vshrl.u32 %v463, 7
    %v465 = vsub.s32 0, %v464
    %v466 = vrot.slane %v139, %v465
    %v467 = vlaneseq
    %v468 = vshrl.u32 %v467, 7
    %v469 = vsub.s32 1, %v468
    %v470 = vrot.slane %v139, %v469
    %v471 = vlaneseq
    %v472 = vshrl.u32 %v471, 7
    %v473 = vsub.s32 2, %v472
    %v474 = vrot.slane %v139, %v473
    %v475 = vlaneseq
    %v476 = vshrl.u32 %v475, 7
    %v477 = vsub.s32 3, %v476
    %v478 = vrot.slane %v139, %v477
    %v479 = vlaneseq
    %v480 = vshrl.u32 %v479, 7
    %v481 = vsub.s32 4, %v480
    %v482 = vrot.slane %v139, %v481
    %v483 = vlaneseq
    %v484 = vshrl.u32 %v483, 7
    %v485 = vsub.s32 5, %v484
    %v486 = vrot.slane %v139, %v485
    %v487 = vlaneseq
    %v488 = vshrl.u32 %v487, 7
    %v489 = vsub.s32 6, %v488
    %v490 = vrot.slane %v139, %v489
    %v491 = vlaneseq
    %v492 = vshrl.u32 %v491, 7
    %v493 = vsub.s32 7, %v492
    %v494 = vrot.slane %v139, %v493
    %v495 = vlaneseq
    %v496 = vshrl.u32 %v495, 7
    %v497 = vsub.s32 0, %v496
    %v498 = vrot.slane %v142, %v497
    %v499 = vlaneseq
    %v500 = vshrl.u32 %v499, 7
    %v501 = vsub.s32 1, %v500
    %v502 = vrot.slane %v142, %v501
    %v503 = vlaneseq
    %v504 = vshrl.u32 %v503, 7
    %v505 = vsub.s32 2, %v504
    %v506 = vrot.slane %v142, %v505
    %v507 = vlaneseq
    %v508 = vshrl.u32 %v507, 7
    %v509 = vsub.s32 3, %v508
    %v510 = vrot.slane %v142, %v509
    %v511 = vlaneseq
    %v512 = vshrl.u32 %v511, 7
    %v513 = vsub.s32 4, %v512
    %v514 = vrot.slane %v142, %v513
    %v515 = vlaneseq
    %v516 = vshrl.u32 %v515, 7
    %v517 = vsub.s32 5, %v516
    %v518 = vrot.slane %v142, %v517
    %v519 = vlaneseq
    %v520 = vshrl.u32 %v519, 7
    %v521 = vsub.s32 6, %v520
    %v522 = vrot.slane %v142, %v521
    %v523 = vlaneseq
    %v524 = vshrl.u32 %v523, 7
    %v525 = vsub.s32 7, %v524
    %v526 = vrot.slane %v142, %v525
    %v527 = vlaneseq
    %v528 = vshrl.u32 %v527, 7
    %v529 = vsub.s32 0, %v528
    %v530 = vrot.slane %v145, %v529
    %v531 = vlaneseq
    %v532 = vshrl.u32 %v531, 7
    %v533 = vsub.s32 1, %v532
    %v534 = vrot.slane %v145, %v533
    %v535 = vlaneseq
    %v536 = vshrl.u32 %v535, 7
    %v537 = vsub.s32 2, %v536
    %v538 = vrot.slane %v145, %v537
    %v539 = vlaneseq
    %v540 = vshrl.u32 %v539, 7
    %v541 = vsub.s32 3, %v540
    %v542 = vrot.slane %v145, %v541
    %v543 = vlaneseq
    %v544 = vshrl.u32 %v543, 7
    %v545 = vsub.s32 4, %v544
    %v546 = vrot.slane %v145, %v545
    %v547 = vlaneseq
    %v548 = vshrl.u32 %v547, 7
    %v549 = vsub.s32 5, %v548
    %v550 = vrot.slane %v145, %v549
    %v551 = vlaneseq
    %v552 = vshrl.u32 %v551, 7
    %v553 = vsub.s32 6, %v552
    %v554 = vrot.slane %v145, %v553
    %v555 = vlaneseq
    %v556 = vshrl.u32 %v555, 7
    %v557 = vsub.s32 7, %v556
    %v558 = vrot.slane %v145, %v557
    %v559 = vlaneseq
    %v560 = vshrl.u32 %v559, 7
    %v561 = vsub.s32 0, %v560
    %v562 = vrot.slane %v148, %v561
    %v563 = vlaneseq
    %v564 = vshrl.u32 %v563, 7
    %v565 = vsub.s32 1, %v564
    %v566 = vrot.slane %v148, %v565
    %v567 = vlaneseq
    %v568 = vshrl.u32 %v567, 7
    %v569 = vsub.s32 2, %v568
    %v570 = vrot.slane %v148, %v569
    %v571 = vlaneseq
    %v572 = vshrl.u32 %v571, 7
    %v573 = vsub.s32 3, %v572
    %v574 = vrot.slane %v148, %v573
    %v575 = vlaneseq
    %v576 = vshrl.u32 %v575, 7
    %v577 = vsub.s32 4, %v576
    %v578 = vrot.slane %v148, %v577
    %v579 = vlaneseq
    %v580 = vshrl.u32 %v579, 7
    %v581 = vsub.s32 5, %v580
    %v582 = vrot.slane %v148, %v581
    %v583 = vlaneseq
    %v584 = vshrl.u32 %v583, 7
    %v585 = vsub.s32 6, %v584
    %v586 = vrot.slane %v148, %v585
    %v587 = vlaneseq
    %v588 = vshrl.u32 %v587, 7
    %v589 = vsub.s32 7, %v588
    %v590 = vrot.slane %v148, %v589
    %v591 = vlaneseq
    %v592 = vshrl.u32 %v591, 7
    %v593 = vsub.s32 0, %v592
    %v594 = vrot.slane %v151, %v593
    %v595 = vlaneseq
    %v596 = vshrl.u32 %v595, 7
    %v597 = vsub.s32 1, %v596
    %v598 = vrot.slane %v151, %v597
    %v599 = vlaneseq
    %v600 = vshrl.u32 %v599, 7
    %v601 = vsub.s32 2, %v600
    %v602 = vrot.slane %v151, %v601
    %v603 = vlaneseq
    %v604 = vshrl.u32 %v603, 7
    %v605 = vsub.s32 3, %v604
    %v606 = vrot.slane %v151, %v605
    %v607 = vlaneseq
    %v608 = vshrl.u32 %v607, 7
    %v609 = vsub.s32 4, %v608
    %v610 = vrot.slane %v151, %v609
    %v611 = vlaneseq
    %v612 = vshrl.u32 %v611, 7
    %v613 = vsub.s32 5, %v612
    %v614 = vrot.slane %v151, %v613
    %v615 = vlaneseq
    %v616 = vshrl.u32 %v615, 7
    %v617 = vsub.s32 6, %v616
    %v618 = vrot.slane %v151, %v617
    %v619 = vlaneseq
    %v620 = vshrl.u32 %v619, 7
    %v621 = vsub.s32 7, %v620
    %v622 = vrot.slane %v151, %v621
    %v623 = vlaneseq
    %v624 = vshrl.u32 %v623, 7
    %v625 = vsub.s32 0, %v624
    %v626 = vrot.slane %v154, %v625
    %v627 = vlaneseq
    %v628 = vshrl.u32 %v627, 7
    %v629 = vsub.s32 1, %v628
    %v630 = vrot.slane %v154, %v629
    %v631 = vlaneseq
    %v632 = vshrl.u32 %v631, 7
    %v633 = vsub.s32 2, %v632
    %v634 = vrot.slane %v154, %v633
    %v635 = vlaneseq
    %v636 = vshrl.u32 %v635, 7
    %v637 = vsub.s32 3, %v636
    %v638 = vrot.slane %v154, %v637
    %v639 = vlaneseq
    %v640 = vshrl.u32 %v639, 7
    %v641 = vsub.s32 4, %v640
    %v642 = vrot.slane %v154, %v641
    %v643 = vlaneseq
    %v644 = vshrl.u32 %v643, 7
    %v645 = vsub.s32 5, %v644
    %v646 = vrot.slane %v154, %v645
    %v647 = vlaneseq
    %v648 = vshrl.u32 %v647, 7
    %v649 = vsub.s32 6, %v648
    %v650 = vrot.slane %v154, %v649
    %v651 = vlaneseq
    %v652 = vshrl.u32 %v651, 7
    %v653 = vsub.s32 7, %v652
    %v654 = vrot.slane %v154, %v653
    %v655 = vlaneseq
    %v656 = vshrl.u32 %v655, 7
    %v657 = vsub.s32 0, %v656
    %v658 = vrot.slane %v157, %v657
    %v659 = vlaneseq
    %v660 = vshrl.u32 %v659, 7
    %v661 = vsub.s32 1, %v660
    %v662 = vrot.slane %v157, %v661
    %v663 = vlaneseq
    %v664 = vshrl.u32 %v663, 7
    %v665 = vsub.s32 2, %v664
    %v666 = vrot.slane %v157, %v665
    %v667 = vlaneseq
    %v668 = vshrl.u32 %v667, 7
    %v669 = vsub.s32 3, %v668
    %v670 = vrot.slane %v157, %v669
    %v671 = vlaneseq
    %v672 = vshrl.u32 %v671, 7
    %v673 = vsub.s32 4, %v672
    %v674 = vrot.slane %v157, %v673
    %v675 = vlaneseq
    %v676 = vshrl.u32 %v675, 7
    %v677 = vsub.s32 5, %v676
    %v678 = vrot.slane %v157, %v677
    %v679 = vlaneseq
    %v680 = vshrl.u32 %v679, 7
    %v681 = vsub.s32 6, %v680
    %v682 = vrot.slane %v157, %v681
    %v683 = vlaneseq
    %v684 = vshrl.u32 %v683, 7
    %v685 = vsub.s32 7, %v684
    %v686 = vrot.slane %v157, %v685
    %v687 = vcombine.low %v178, %v182
    %v688 = vcombine.low %v186, %v190
    %v689 = vcombine.low %v194, %v198
    %v690 = vcombine.low %v202, %v206
    %v692 = vunpack.c.l.s4 1966171168
    %v693 = vunpack.c.0.s8 %v692
    %v694 = vlaneseq
    %v695 = vshrl.u32 %v694, 7
    %v696 = vsub.s32 %v693, %v695
    %v697 = vrot.slane %v687, %v696
    %v699 = vunpack.c.l.s4 1966171168
    %v700 = vunpack.c.0.s8 %v699
    %v701 = vlaneseq
    %v702 = vshrl.u32 %v701, 7
    %v703 = vsub.s32 %v700, %v702
    %v704 = vrot.slane %v688, %v703
    %v706 = vunpack.c.l.s4 1966171168
    %v707 = vunpack.c.0.s8 %v706
    %v708 = vlaneseq
    %v709 = vshrl.u32 %v708, 7
    %v710 = vsub.s32 %v707, %v709
    %v711 = vrot.slane %v689, %v710
    %v713 = vunpack.c.l.s4 1966171168
    %v714 = vunpack.c.0.s8 %v713
    %v715 = vlaneseq
    %v716 = vshrl.u32 %v715, 7
    %v717 = vsub.s32 %v714, %v716
    %v718 = vrot.slane %v690, %v717
    %v719 = vcombine.low %v697, %v704
    %v720 = vcombine.low %v711, %v718
    %v722 = vunpack.c.l.s4 1966171168
    %v723 = vunpack.c.0.s8 %v722
    %v724 = vlaneseq
    %v725 = vshrl.u32 %v724, 7
    %v726 = vsub.s32 %v723, %v725
    %v727 = vrot.slane %v719, %v726
    %v729 = vunpack.c.l.s4 1966171168
    %v730 = vunpack.c.0.s8 %v729
    %v731 = vlaneseq
    %v732 = vshrl.u32 %v731, 7
    %v733 = vsub.s32 %v730, %v732
    %v734 = vrot.slane %v720, %v733
    %v735 = vcombine.low %v727, %v734
    %v736 = vcombine.low %v210, %v214
    %v737 = vcombine.low %v218, %v222
    %v738 = vcombine.low %v226, %v230
    %v739 = vcombine.low %v234, %v238
    %v741 = vunpack.c.l.s4 1966171168
    %v742 = vunpack.c.0.s8 %v741
    %v743 = vlaneseq
    %v744 = vshrl.u32 %v743, 7
    %v745 = vsub.s32 %v742, %v744
    %v746 = vrot.slane %v736, %v745
    %v748 = vunpack.c.l.s4 1966171168
    %v749 = vunpack.c.0.s8 %v748
    %v750 = vlaneseq
    %v751 = vshrl.u32 %v750, 7
    %v752 = vsub.s32 %v749, %v751
    %v753 = vrot.slane %v737, %v752
    %v755 = vunpack.c.l.s4 1966171168
    %v756 = vunpack.c.0.s8 %v755
    %v757 = vlaneseq
    %v758 = vshrl.u32 %v757, 7
    %v759 = vsub.s32 %v756, %v758
    %v760 = vrot.slane %v738, %v759
    %v762 = vunpack.c.l.s4 1966171168
    %v763 = vunpack.c.0.s8 %v762
    %v764 = vlaneseq
    %v765 = vshrl.u32 %v764, 7
    %v766 = vsub.s32 %v763, %v765
    %v767 = vrot.slane %v739, %v766
    %v768 = vcombine.low %v746, %v753
    %v769 = vcombine.low %v760, %v767
    %v771 = vunpack.c.l.s4 1966171168
    %v772 = vunpack.c.0.s8 %v771
    %v773 = vlaneseq
    %v774 = vshrl.u32 %v773, 7
    %v775 = vsub.s32 %v772, %v774
    %v776 = vrot.slane %v768, %v775
    %v778 = vunpack.c.l.s4 1966171168
    %v779 = vunpack.c.0.s8 %v778
    %v780 = vlaneseq
    %v781 = vshrl.u32 %v780, 7
    %v782 = vsub.s32 %v779, %v781
    %v783 = vrot.slane %v769, %v782
    %v784 = vcombine.low %v776, %v783
    %v785 = vcombine.low %v242, %v246
    %v786 = vcombine.low %v250, %v254
    %v787 = vcombine.low %v258, %v262
    %v788 = vcombine.low %v266, %v270
    %v790 = vunpack.c.l.s4 1966171168
    %v791 = vunpack.c.0.s8 %v790
    %v792 = vlaneseq
    %v793 = vshrl.u32 %v792, 7
    %v794 = vsub.s32 %v791, %v793
    %v795 = vrot.slane %v785, %v794
    %v797 = vunpack.c.l.s4 1966171168
    %v798 = vunpack.c.0.s8 %v797
    %v799 = vlaneseq
    %v800 = vshrl.u32 %v799, 7
    %v801 = vsub.s32 %v798, %v800
    %v802 = vrot.slane %v786, %v801
    %v804 = vunpack.c.l.s4 1966171168
    %v805 = vunpack.c.0.s8 %v804
    %v806 = vlaneseq
    %v807 = vshrl.u32 %v806, 7
    %v808 = vsub.s32 %v805, %v807
    %v809 = vrot.slane %v787, %v808
    %v811 = vunpack.c.l.s4 1966171168
    %v812 = vunpack.c.0.s8 %v811
    %v813 = vlaneseq
    %v814 = vshrl.u32 %v813, 7
    %v815 = vsub.s32 %v812, %v814
    %v816 = vrot.slane %v788, %v815
    %v817 = vcombine.low %v795, %v802
    %v818 = vcombine.low %v809, %v816
    %v820 = vunpack.c.l.s4 1966171168
    %v821 = vunpack.c.0.s8 %v820
    %v822 = vlaneseq
    %v823 = vshrl.u32 %v822, 7
    %v824 = vsub.s32 %v821, %v823
    %v825 = vrot.slane %v817, %v824
    %v827 = vunpack.c.l.s4 1966171168
    %v828 = vunpack.c.0.s8 %v827
    %v829 = vlaneseq
    %v830 = vshrl.u32 %v829, 7
    %v831 = vsub.s32 %v828, %v830
    %v832 = vrot.slane %v818, %v831
    %v833 = vcombine.low %v825, %v832
    %v834 = vcombine.low %v274, %v278
    %v835 = vcombine.low %v282, %v286
    %v836 = vcombine.low %v290, %v294
    %v837 = vcombine.low %v298, %v302
    %v839 = vunpack.c.l.s4 1966171168
    %v840 = vunpack.c.0.s8 %v839
    %v841 = vlaneseq
    %v842 = vshrl.u32 %v841, 7
    %v843 = vsub.s32 %v840, %v842
    %v844 = vrot.slane %v834, %v843
    %v846 = vunpack.c.l.s4 1966171168
    %v847 = vunpack.c.0.s8 %v846
    %v848 = vlaneseq
    %v849 = vshrl.u32 %v848, 7
    %v850 = vsub.s32 %v847, %v849
    %v851 = vrot.slane %v835, %v850
    %v853 = vunpack.c.l.s4 1966171168
    %v854 = vunpack.c.0.s8 %v853
    %v855 = vlaneseq
    %v856 = vshrl.u32 %v855, 7
    %v857 = vsub.s32 %v854, %v856
    %v858 = vrot.slane %v836, %v857
    %v860 = vunpack.c.l.s4 1966171168
    %v861 = vunpack.c.0.s8 %v860
    %v862 = vlaneseq
    %v863 = vshrl.u32 %v862, 7
    %v864 = vsub.s32 %v861, %v863
    %v865 = vrot.slane %v837, %v864
    %v866 = vcombine.low %v844, %v851
    %v867 = vcombine.low %v858, %v865
    %v869 = vunpack.c.l.s4 1966171168
    %v870 = vunpack.c.0.s8 %v869
    %v871 = vlaneseq
    %v872 = vshrl.u32 %v871, 7
    %v873 = vsub.s32 %v870, %v872
    %v874 = vrot.slane %v866, %v873
    %v876 = vunpack.c.l.s4 1966171168
    %v877 = vunpack.c.0.s8 %v876
    %v878 = vlaneseq
    %v879 = vshrl.u32 %v878, 7
    %v880 = vsub.s32 %v877, %v879
    %v881 = vrot.slane %v867, %v880
    %v882 = vcombine.low %v874, %v881
    %v883 = vcombine.low %v306, %v310
    %v884 = vcombine.low %v314, %v318
    %v885 = vcombine.low %v322, %v326
    %v886 = vcombine.low %v330, %v334
    %v888 = vunpack.c.l.s4 1966171168
    %v889 = vunpack.c.0.s8 %v888
    %v890 = vlaneseq
    %v891 = vshrl.u32 %v890, 7
    %v892 = vsub.s32 %v889, %v891
    %v893 = vrot.slane %v883, %v892
    %v895 = vunpack.c.l.s4 1966171168
    %v896 = vunpack.c.0.s8 %v895
    %v897 = vlaneseq
    %v898 = vshrl.u32 %v897, 7
    %v899 = vsub.s32 %v896, %v898
    %v900 = vrot.slane %v884, %v899
    %v902 = vunpack.c.l.s4 1966171168
    %v903 = vunpack.c.0.s8 %v902
    %v904 = vlaneseq
    %v905 = vshrl.u32 %v904, 7
    %v906 = vsub.s32 %v903, %v905
    %v907 = vrot.slane %v885, %v906
    %v909 = vunpack.c.l.s4 1966171168
    %v910 = vunpack.c.0.s8 %v909
    %v911 = vlaneseq
    %v912 = vshrl.u32 %v911, 7
    %v913 = vsub.s32 %v910, %v912
    %v914 = vrot.slane %v886, %v913
    %v915 = vcombine.low %v893, %v900
    %v916 = vcombine.low %v907, %v914
    %v918 = vunpack.c.l.s4 1966171168
    %v919 = vunpack.c.0.s8 %v918
    %v920 = vlaneseq
    %v921 = vshrl.u32 %v920, 7
    %v922 = vsub.s32 %v919, %v921
    %v923 = vrot.slane %v915, %v922
    %v925 = vunpack.c.l.s4 1966171168
    %v926 = vunpack.c.0.s8 %v925
    %v927 = vlaneseq
    %v928 = vshrl.u32 %v927, 7
    %v929 = vsub.s32 %v926, %v928
    %v930 = vrot.slane %v916, %v929
    %v931 = vcombine.low %v923, %v930
    %v932 = vcombine.low %v338, %v342
    %v933 = vcombine.low %v346, %v350
    %v934 = vcombine.low %v354, %v358
    %v935 = vcombine.low %v362, %v366
    %v937 = vunpack.c.l.s4 1966171168
    %v938 = vunpack.c.0.s8 %v937
    %v939 = vlaneseq
    %v940 = vshrl.u32 %v939, 7
    %v941 = vsub.s32 %v938, %v940
    %v942 = vrot.slane %v932, %v941
    %v944 = vunpack.c.l.s4 1966171168
    %v945 = vunpack.c.0.s8 %v944
    %v946 = vlaneseq
    %v947 = vshrl.u32 %v946, 7
    %v948 = vsub.s32 %v945, %v947
    %v949 = vrot.slane %v933, %v948
    %v951 = vunpack.c.l.s4 1966171168
    %v952 = vunpack.c.0.s8 %v951
    %v953 = vlaneseq
    %v954 = vshrl.u32 %v953, 7
    %v955 = vsub.s32 %v952, %v954
    %v956 = vrot.slane %v934, %v955
    %v958 = vunpack.c.l.s4 1966171168
    %v959 = vunpack.c.0.s8 %v958
    %v960 = vlaneseq
    %v961 = vshrl.u32 %v960, 7
    %v962 = vsub.s32 %v959, %v961
    %v963 = vrot.slane %v935, %v962
    %v964 = vcombine.low %v942, %v949
    %v965 = vcombine.low %v956, %v963
    %v967 = vunpack.c.l.s4 1966171168
    %v968 = vunpack.c.0.s8 %v967
    %v969 = vlaneseq
    %v970 = vshrl.u32 %v969, 7
    %v971 = vsub.s32 %v968, %v970
    %v972 = vrot.slane %v964, %v971
    %v974 = vunpack.c.l.s4 1966171168
    %v975 = vunpack.c.0.s8 %v974
    %v976 = vlaneseq
    %v977 = vshrl.u32 %v976, 7
    %v978 = vsub.s32 %v975, %v977
    %v979 = vrot.slane %v965, %v978
    %v980 = vcombine.low %v972, %v979
    %v981 = vcombine.low %v370, %v374
    %v982 = vcombine.low %v378, %v382
    %v983 = vcombine.low %v386, %v390
    %v984 = vcombine.low %v394, %v398
    %v986 = vunpack.c.l.s4 1966171168
    %v987 = vunpack.c.0.s8 %v986
    %v988 = vlaneseq
    %v989 = vshrl.u32 %v988, 7
    %v990 = vsub.s32 %v987, %v989
    %v991 = vrot.slane %v981, %v990
    %v993 = vunpack.c.l.s4 1966171168
    %v994 = vunpack.c.0.s8 %v993
    %v995 = vlaneseq
    %v996 = vshrl.u32 %v995, 7
    %v997 = vsub.s32 %v994, %v996
    %v998 = vrot.slane %v982, %v997
    %v1000 = vunpack.c.l.s4 1966171168
    %v1001 = vunpack.c.0.s8 %v1000
    %v1002 = vlaneseq
    %v1003 = vshrl.u32 %v1002, 7
    %v1004 = vsub.s32 %v1001, %v1003
    %v1005 = vrot.slane %v983, %v1004
    %v1007 = vunpack.c.l.s4 1966171168
    %v1008 = vunpack.c.0.s8 %v1007
    %v1009 = vlaneseq
    %v1010 = vshrl.u32 %v1009, 7
    %v1011 = vsub.s32 %v1008, %v1010
    %v1012 = vrot.slane %v984, %v1011
    %v1013 = vcombine.low %v991, %v998
    %v1014 = vcombine.low %v1005, %v1012
    %v1016 = vunpack.c.l.s4 1966171168
    %v1017 = vunpack.c.0.s8 %v1016
    %v1018 = vlaneseq
    %v1019 = vshrl.u32 %v1018, 7
    %v1020 = vsub.s32 %v1017, %v1019
    %v1021 = vrot.slane %v1013, %v1020
    %v1023 = vunpack.c.l.s4 1966171168
    %v1024 = vunpack.c.0.s8 %v1023
    %v1025 = vlaneseq
    %v1026 = vshrl.u32 %v1025, 7
    %v1027 = vsub.s32 %v1024, %v1026
    %v1028 = vrot.slane %v1014, %v1027
    %v1029 = vcombine.low %v1021, %v1028
    %v1030 = vcombine.low %v402, %v406
    %v1031 = vcombine.low %v410, %v414
    %v1032 = vcombine.low %v418, %v422
    %v1033 = vcombine.low %v426, %v430
    %v1035 = vunpack.c.l.s4 1966171168
    %v1036 = vunpack.c.0.s8 %v1035
    %v1037 = vlaneseq
    %v1038 = vshrl.u32 %v1037, 7
    %v1039 = vsub.s32 %v1036, %v1038
    %v1040 = vrot.slane %v1030, %v1039
    %v1042 = vunpack.c.l.s4 1966171168
    %v1043 = vunpack.c.0.s8 %v1042
    %v1044 = vlaneseq
    %v1045 = vshrl.u32 %v1044, 7
    %v1046 = vsub.s32 %v1043, %v1045
    %v1047 = vrot.slane %v1031, %v1046
    %v1049 = vunpack.c.l.s4 1966171168
    %v1050 = vunpack.c.0.s8 %v1049
    %v1051 = vlaneseq
    %v1052 = vshrl.u32 %v1051, 7
    %v1053 = vsub.s32 %v1050, %v1052
    %v1054 = vrot.slane %v1032, %v1053
    %v1056 = vunpack.c.l.s4 1966171168
    %v1057 = vunpack.c.0.s8 %v1056
    %v1058 = vlaneseq
    %v1059 = vshrl.u32 %v1058, 7
    %v1060 = vsub.s32 %v1057, %v1059
    %v1061 = vrot.slane %v1033, %v1060
    %v1062 = vcombine.low %v1040, %v1047
    %v1063 = vcombine.low %v1054, %v1061
    %v1065 = vunpack.c.l.s4 1966171168
    %v1066 = vunpack.c.0.s8 %v1065
    %v1067 = vlaneseq
    %v1068 = vshrl.u32 %v1067, 7
    %v1069 = vsub.s32 %v1066, %v1068
    %v1070 = vrot.slane %v1062, %v1069
    %v1072 = vunpack.c.l.s4 1966171168
    %v1073 = vunpack.c.0.s8 %v1072
    %v1074 = vlaneseq
    %v1075 = vshrl.u32 %v1074, 7
    %v1076 = vsub.s32 %v1073, %v1075
    %v1077 = vrot.slane %v1063, %v1076
    %v1078 = vcombine.low %v1070, %v1077
    %v1079 = vcombine.low %v434, %v438
    %v1080 = vcombine.low %v442, %v446
    %v1081 = vcombine.low %v450, %v454
    %v1082 = vcombine.low %v458, %v462
    %v1084 = vunpack.c.l.s4 1966171168
    %v1085 = vunpack.c.0.s8 %v1084
    %v1086 = vlaneseq
    %v1087 = vshrl.u32 %v1086, 7
    %v1088 = vsub.s32 %v1085, %v1087
    %v1089 = vrot.slane %v1079, %v1088
    %v1091 = vunpack.c.l.s4 1966171168
    %v1092 = vunpack.c.0.s8 %v1091
    %v1093 = vlaneseq
    %v1094 = vshrl.u32 %v1093, 7
    %v1095 = vsub.s32 %v1092, %v1094
    %v1096 = vrot.slane %v1080, %v1095
    %v1098 = vunpack.c.l.s4 1966171168
    %v1099 = vunpack.c.0.s8 %v1098
    %v1100 = vlaneseq
    %v1101 = vshrl.u32 %v1100, 7
    %v1102 = vsub.s32 %v1099, %v1101
    %v1103 = vrot.slane %v1081, %v1102
    %v1105 = vunpack.c.l.s4 1966171168
    %v1106 = vunpack.c.0.s8 %v1105
    %v1107 = vlaneseq
    %v1108 = vshrl.u32 %v1107, 7
    %v1109 = vsub.s32 %v1106, %v1108
    %v1110 = vrot.slane %v1082, %v1109
    %v1111 = vcombine.low %v1089, %v1096
    %v1112 = vcombine.low %v1103, %v1110
    %v1114 = vunpack.c.l.s4 1966171168
    %v1115 = vunpack.c.0.s8 %v1114
    %v1116 = vlaneseq
    %v1117 = vshrl.u32 %v1116, 7
    %v1118 = vsub.s32 %v1115, %v1117
    %v1119 = vrot.slane %v1111, %v1118
    %v1121 = vunpack.c.l.s4 1966171168
    %v1122 = vunpack.c.0.s8 %v1121
    %v1123 = vlaneseq
    %v1124 = vshrl.u32 %v1123, 7
    %v1125 = vsub.s32 %v1122, %v1124
    %v1126 = vrot.slane %v1112, %v1125
    %v1127 = vcombine.low %v1119, %v1126
    %v1128 = vcombine.low %v466, %v470
    %v1129 = vcombine.low %v474, %v478
    %v1130 = vcombine.low %v482, %v486
    %v1131 = vcombine.low %v490, %v494
    %v1133 = vunpack.c.l.s4 1966171168
    %v1134 = vunpack.c.0.s8 %v1133
    %v1135 = vlaneseq
    %v1136 = vshrl.u32 %v1135, 7
    %v1137 = vsub.s32 %v1134, %v1136
    %v1138 = vrot.slane %v1128, %v1137
    %v1140 = vunpack.c.l.s4 1966171168
    %v1141 = vunpack.c.0.s8 %v1140
    %v1142 = vlaneseq
    %v1143 = vshrl.u32 %v1142, 7
    %v1144 = vsub.s32 %v1141, %v1143
    %v1145 = vrot.slane %v1129, %v1144
    %v1147 = vunpack.c.l.s4 1966171168
    %v1148 = vunpack.c.0.s8 %v1147
    %v1149 = vlaneseq
    %v1150 = vshrl.u32 %v1149, 7
    %v1151 = vsub.s32 %v1148, %v1150
    %v1152 = vrot.slane %v1130, %v1151
    %v1154 = vunpack.c.l.s4 1966171168
    %v1155 = vunpack.c.0.s8 %v1154
    %v1156 = vlaneseq
    %v1157 = vshrl.u32 %v1156, 7
    %v1158 = vsub.s32 %v1155, %v1157
    %v1159 = vrot.slane %v1131, %v1158
    %v1160 = vcombine.low %v1138, %v1145
    %v1161 = vcombine.low %v1152, %v1159
    %v1163 = vunpack.c.l.s4 1966171168
    %v1164 = vunpack.c.0.s8 %v1163
    %v1165 = vlaneseq
    %v1166 = vshrl.u32 %v1165, 7
    %v1167 = vsub.s32 %v1164, %v1166
    %v1168 = vrot.slane %v1160, %v1167
    %v1170 = vunpack.c.l.s4 1966171168
    %v1171 = vunpack.c.0.s8 %v1170
    %v1172 = vlaneseq
    %v1173 = vshrl.u32 %v1172, 7
    %v1174 = vsub.s32 %v1171, %v1173
    %v1175 = vrot.slane %v1161, %v1174
    %v1176 = vcombine.low %v1168, %v1175
    %v1177 = vcombine.low %v498, %v502
    %v1178 = vcombine.low %v506, %v510
    %v1179 = vcombine.low %v514, %v518
    %v1180 = vcombine.low %v522, %v526
    %v1182 = vunpack.c.l.s4 1966171168
    %v1183 = vunpack.c.0.s8 %v1182
    %v1184 = vlaneseq
    %v1185 = vshrl.u32 %v1184, 7
    %v1186 = vsub.s32 %v1183, %v1185
    %v1187 = vrot.slane %v1177, %v1186
    %v1189 = vunpack.c.l.s4 1966171168
    %v1190 = vunpack.c.0.s8 %v1189
    %v1191 = vlaneseq
    %v1192 = vshrl.u32 %v1191, 7
    %v1193 = vsub.s32 %v1190, %v1192
    %v1194 = vrot.slane %v1178, %v1193
    %v1196 = vunpack.c.l.s4 1966171168
    %v1197 = vunpack.c.0.s8 %v1196
    %v1198 = vlaneseq
    %v1199 = vshrl.u32 %v1198, 7
    %v1200 = vsub.s32 %v1197, %v1199
    %v1201 = vrot.slane %v1179, %v1200
    %v1203 = vunpack.c.l.s4 1966171168
    %v1204 = vunpack.c.0.s8 %v1203
    %v1205 = vlaneseq
    %v1206 = vshrl.u32 %v1205, 7
    %v1207 = vsub.s32 %v1204, %v1206
    %v1208 = vrot.slane %v1180, %v1207
    %v1209 = vcombine.low %v1187, %v1194
    %v1210 = vcombine.low %v1201, %v1208
    %v1212 = vunpack.c.l.s4 1966171168
    %v1213 = vunpack.c.0.s8 %v1212
    %v1214 = vlaneseq
    %v1215 = vshrl.u32 %v1214, 7
    %v1216 = vsub.s32 %v1213, %v1215
    %v1217 = vrot.slane %v1209, %v1216
    %v1219 = vunpack.c.l.s4 1966171168
    %v1220 = vunpack.c.0.s8 %v1219
    %v1221 = vlaneseq
    %v1222 = vshrl.u32 %v1221, 7
    %v1223 = vsub.s32 %v1220, %v1222
    %v1224 = vrot.slane %v1210, %v1223
    %v1225 = vcombine.low %v1217, %v1224
    %v1226 = vcombine.low %v530, %v534
    %v1227 = vcombine.low %v538, %v542
    %v1228 = vcombine.low %v546, %v550
    %v1229 = vcombine.low %v554, %v558
    %v1231 = vunpack.c.l.s4 1966171168
    %v1232 = vunpack.c.0.s8 %v1231
    %v1233 = vlaneseq
    %v1234 = vshrl.u32 %v1233, 7
    %v1235 = vsub.s32 %v1232, %v1234
    %v1236 = vrot.slane %v1226, %v1235
    %v1238 = vunpack.c.l.s4 1966171168
    %v1239 = vunpack.c.0.s8 %v1238
    %v1240 = vlaneseq
    %v1241 = vshrl.u32 %v1240, 7
    %v1242 = vsub.s32 %v1239, %v1241
    %v1243 = vrot.slane %v1227, %v1242
    %v1245 = vunpack.c.l.s4 1966171168
    %v1246 = vunpack.c.0.s8 %v1245
    %v1247 = vlaneseq
    %v1248 = vshrl.u32 %v1247, 7
    %v1249 = vsub.s32 %v1246, %v1248
    %v1250 = vrot.slane %v1228, %v1249
    %v1252 = vunpack.c.l.s4 1966171168
    %v1253 = vunpack.c.0.s8 %v1252
    %v1254 = vlaneseq
    %v1255 = vshrl.u32 %v1254, 7
    %v1256 = vsub.s32 %v1253, %v1255
    %v1257 = vrot.slane %v1229, %v1256
    %v1258 = vcombine.low %v1236, %v1243
    %v1259 = vcombine.low %v1250, %v1257
    %v1261 = vunpack.c.l.s4 1966171168
    %v1262 = vunpack.c.0.s8 %v1261
    %v1263 = vlaneseq
    %v1264 = vshrl.u32 %v1263, 7
    %v1265 = vsub.s32 %v1262, %v1264
    %v1266 = vrot.slane %v1258, %v1265
    %v1268 = vunpack.c.l.s4 1966171168
    %v1269 = vunpack.c.0.s8 %v1268
    %v1270 = vlaneseq
    %v1271 = vshrl.u32 %v1270, 7
    %v1272 = vsub.s32 %v1269, %v1271
    %v1273 = vrot.slane %v1259, %v1272
    %v1274 = vcombine.low %v1266, %v1273
    %v1275 = vcombine.low %v562, %v566
    %v1276 = vcombine.low %v570, %v574
    %v1277 = vcombine.low %v578, %v582
    %v1278 = vcombine.low %v586, %v590
    %v1280 = vunpack.c.l.s4 1966171168
    %v1281 = vunpack.c.0.s8 %v1280
    %v1282 = vlaneseq
    %v1283 = vshrl.u32 %v1282, 7
    %v1284 = vsub.s32 %v1281, %v1283
    %v1285 = vrot.slane %v1275, %v1284
    %v1287 = vunpack.c.l.s4 1966171168
    %v1288 = vunpack.c.0.s8 %v1287
    %v1289 = vlaneseq
    %v1290 = vshrl.u32 %v1289, 7
    %v1291 = vsub.s32 %v1288, %v1290
    %v1292 = vrot.slane %v1276, %v1291
    %v1294 = vunpack.c.l.s4 1966171168
    %v1295 = vunpack.c.0.s8 %v1294
    %v1296 = vlaneseq
    %v1297 = vshrl.u32 %v1296, 7
    %v1298 = vsub.s32 %v1295, %v1297
    %v1299 = vrot.slane %v1277, %v1298
    %v1301 = vunpack.c.l.s4 1966171168
    %v1302 = vunpack.c.0.s8 %v1301
    %v1303 = vlaneseq
    %v1304 = vshrl.u32 %v1303, 7
    %v1305 = vsub.s32 %v1302, %v1304
    %v1306 = vrot.slane %v1278, %v1305
    %v1307 = vcombine.low %v1285, %v1292
    %v1308 = vcombine.low %v1299, %v1306
    %v1310 = vunpack.c.l.s4 1966171168
    %v1311 = vunpack.c.0.s8 %v1310
    %v1312 = vlaneseq
    %v1313 = vshrl.u32 %v1312, 7
    %v1314 = vsub.s32 %v1311, %v1313
    %v1315 = vrot.slane %v1307, %v1314
    %v1317 = vunpack.c.l.s4 1966171168
    %v1318 = vunpack.c.0.s8 %v1317
    %v1319 = vlaneseq
    %v1320 = vshrl.u32 %v1319, 7
    %v1321 = vsub.s32 %v1318, %v1320
    %v1322 = vrot.slane %v1308, %v1321
    %v1323 = vcombine.low %v1315, %v1322
    %v1324 = vcombine.low %v594, %v598
    %v1325 = vcombine.low %v602, %v606
    %v1326 = vcombine.low %v610, %v614
    %v1327 = vcombine.low %v618, %v622
    %v1329 = vunpack.c.l.s4 1966171168
    %v1330 = vunpack.c.0.s8 %v1329
    %v1331 = vlaneseq
    %v1332 = vshrl.u32 %v1331, 7
    %v1333 = vsub.s32 %v1330, %v1332
    %v1334 = vrot.slane %v1324, %v1333
    %v1336 = vunpack.c.l.s4 1966171168
    %v1337 = vunpack.c.0.s8 %v1336
    %v1338 = vlaneseq
    %v1339 = vshrl.u32 %v1338, 7
    %v1340 = vsub.s32 %v1337, %v1339
    %v1341 = vrot.slane %v1325, %v1340
    %v1343 = vunpack.c.l.s4 1966171168
    %v1344 = vunpack.c.0.s8 %v1343
    %v1345 = vlaneseq
    %v1346 = vshrl.u32 %v1345, 7
    %v1347 = vsub.s32 %v1344, %v1346
    %v1348 = vrot.slane %v1326, %v1347
    %v1350 = vunpack.c.l.s4 1966171168
    %v1351 = vunpack.c.0.s8 %v1350
    %v1352 = vlaneseq
    %v1353 = vshrl.u32 %v1352, 7
    %v1354 = vsub.s32 %v1351, %v1353
    %v1355 = vrot.slane %v1327, %v1354
    %v1356 = vcombine.low %v1334, %v1341
    %v1357 = vcombine.low %v1348, %v1355
    %v1359 = vunpack.c.l.s4 1966171168
    %v1360 = vunpack.c.0.s8 %v1359
    %v1361 = vlaneseq
    %v1362 = vshrl.u32 %v1361, 7
    %v1363 = vsub.s32 %v1360, %v1362
    %v1364 = vrot.slane %v1356, %v1363
    %v1366 = vunpack.c.l.s4 1966171168
    %v1367 = vunpack.c.0.s8 %v1366
    %v1368 = vlaneseq
    %v1369 = vshrl.u32 %v1368, 7
    %v1370 = vsub.s32 %v1367, %v1369
    %v1371 = vrot.slane %v1357, %v1370
    %v1372 = vcombine.low %v1364, %v1371
    %v1373 = vcombine.low %v626, %v630
    %v1374 = vcombine.low %v634, %v638
    %v1375 = vcombine.low %v642, %v646
    %v1376 = vcombine.low %v650, %v654
    %v1378 = vunpack.c.l.s4 1966171168
    %v1379 = vunpack.c.0.s8 %v1378
    %v1380 = vlaneseq
    %v1381 = vshrl.u32 %v1380, 7
    %v1382 = vsub.s32 %v1379, %v1381
    %v1383 = vrot.slane %v1373, %v1382
    %v1385 = vunpack.c.l.s4 1966171168
    %v1386 = vunpack.c.0.s8 %v1385
    %v1387 = vlaneseq
    %v1388 = vshrl.u32 %v1387, 7
    %v1389 = vsub.s32 %v1386, %v1388
    %v1390 = vrot.slane %v1374, %v1389
    %v1392 = vunpack.c.l.s4 1966171168
    %v1393 = vunpack.c.0.s8 %v1392
    %v1394 = vlaneseq
    %v1395 = vshrl.u32 %v1394, 7
    %v1396 = vsub.s32 %v1393, %v1395
    %v1397 = vrot.slane %v1375, %v1396
    %v1399 = vunpack.c.l.s4 1966171168
    %v1400 = vunpack.c.0.s8 %v1399
    %v1401 = vlaneseq
    %v1402 = vshrl.u32 %v1401, 7
    %v1403 = vsub.s32 %v1400, %v1402
    %v1404 = vrot.slane %v1376, %v1403
    %v1405 = vcombine.low %v1383, %v1390
    %v1406 = vcombine.low %v1397, %v1404
    %v1408 = vunpack.c.l.s4 1966171168
    %v1409 = vunpack.c.0.s8 %v1408
    %v1410 = vlaneseq
    %v1411 = vshrl.u32 %v1410, 7
    %v1412 = vsub.s32 %v1409, %v1411
    %v1413 = vrot.slane %v1405, %v1412
    %v1415 = vunpack.c.l.s4 1966171168
    %v1416 = vunpack.c.0.s8 %v1415
    %v1417 = vlaneseq
    %v1418 = vshrl.u32 %v1417, 7
    %v1419 = vsub.s32 %v1416, %v1418
    %v1420 = vrot.slane %v1406, %v1419
    %v1421 = vcombine.low %v1413, %v1420
    %v1422 = vcombine.low %v658, %v662
    %v1423 = vcombine.low %v666, %v670
    %v1424 = vcombine.low %v674, %v678
    %v1425 = vcombine.low %v682, %v686
    %v1427 = vunpack.c.l.s4 1966171168
    %v1428 = vunpack.c.0.s8 %v1427
    %v1429 = vlaneseq
    %v1430 = vshrl.u32 %v1429, 7
    %v1431 = vsub.s32 %v1428, %v1430
    %v1432 = vrot.slane %v1422, %v1431
    %v1434 = vunpack.c.l.s4 1966171168
    %v1435 = vunpack.c.0.s8 %v1434
    %v1436 = vlaneseq
    %v1437 = vshrl.u32 %v1436, 7
    %v1438 = vsub.s32 %v1435, %v1437
    %v1439 = vrot.slane %v1423, %v1438
    %v1441 = vunpack.c.l.s4 1966171168
    %v1442 = vunpack.c.0.s8 %v1441
    %v1443 = vlaneseq
    %v1444 = vshrl.u32 %v1443, 7
    %v1445 = vsub.s32 %v1442, %v1444
    %v1446 = vrot.slane %v1424, %v1445
    %v1448 = vunpack.c.l.s4 1966171168
    %v1449 = vunpack.c.0.s8 %v1448
    %v1450 = vlaneseq
    %v1451 = vshrl.u32 %v1450, 7
    %v1452 = vsub.s32 %v1449, %v1451
    %v1453 = vrot.slane %v1425, %v1452
    %v1454 = vcombine.low %v1432, %v1439
    %v1455 = vcombine.low %v1446, %v1453
    %v1457 = vunpack.c.l.s4 1966171168
    %v1458 = vunpack.c.0.s8 %v1457
    %v1459 = vlaneseq
    %v1460 = vshrl.u32 %v1459, 7
    %v1461 = vsub.s32 %v1458, %v1460
    %v1462 = vrot.slane %v1454, %v1461
    %v1464 = vunpack.c.l.s4 1966171168
    %v1465 = vunpack.c.0.s8 %v1464
    %v1466 = vlaneseq
    %v1467 = vshrl.u32 %v1466, 7
    %v1468 = vsub.s32 %v1465, %v1467
    %v1469 = vrot.slane %v1455, %v1468
    %v1470 = vcombine.low %v1462, %v1469
    %1471 = vset.pattern.permute.xlu0 0
    %1472 = vperm.xlu0 %1471, %v735
    %v1473 = vpop.permute.xlu0 %1472
    %1474 = vset.pattern.permute.xlu0 0
    %1475 = vperm.xlu0 %1474, %v784
    %v1476 = vpop.permute.xlu0 %1475
    %1477 = vset.pattern.permute.xlu0 0
    %1478 = vperm.xlu0 %1477, %v833
    %v1479 = vpop.permute.xlu0 %1478
    %1480 = vset.pattern.permute.xlu0 0
    %1481 = vperm.xlu0 %1480, %v882
    %v1482 = vpop.permute.xlu0 %1481
    %1483 = vset.pattern.permute.xlu0 0
    %1484 = vperm.xlu0 %1483, %v931
    %v1485 = vpop.permute.xlu0 %1484
    %1486 = vset.pattern.permute.xlu0 0
    %1487 = vperm.xlu0 %1486, %v980
    %v1488 = vpop.permute.xlu0 %1487
    %1489 = vset.pattern.permute.xlu0 0
    %1490 = vperm.xlu0 %1489, %v1029
    %v1491 = vpop.permute.xlu0 %1490
    %1492 = vset.pattern.permute.xlu0 0
    %1493 = vperm.xlu0 %1492, %v1078
    %v1494 = vpop.permute.xlu0 %1493
    %1495 = vset.pattern.permute.xlu0 0
    %1496 = vperm.xlu0 %1495, %v1127
    %v1497 = vpop.permute.xlu0 %1496
    %1498 = vset.pattern.permute.xlu0 0
    %1499 = vperm.xlu0 %1498, %v1176
    %v1500 = vpop.permute.xlu0 %1499
    %1501 = vset.pattern.permute.xlu0 0
    %1502 = vperm.xlu0 %1501, %v1225
    %v1503 = vpop.permute.xlu0 %1502
    %1504 = vset.pattern.permute.xlu0 0
    %1505 = vperm.xlu0 %1504, %v1274
    %v1506 = vpop.permute.xlu0 %1505
    %1507 = vset.pattern.permute.xlu0 0
    %1508 = vperm.xlu0 %1507, %v1323
    %v1509 = vpop.permute.xlu0 %1508
    %1510 = vset.pattern.permute.xlu0 0
    %1511 = vperm.xlu0 %1510, %v1372
    %v1512 = vpop.permute.xlu0 %1511
    %1513 = vset.pattern.permute.xlu0 0
    %1514 = vperm.xlu0 %1513, %v1421
    %v1515 = vpop.permute.xlu0 %1514
    %1516 = vset.pattern.permute.xlu0 0
    %1517 = vperm.xlu0 %1516, %v1470
    %v1518 = vpop.permute.xlu0 %1517
    %v1519 = vlaneseq
    %v1520 = vand.u32 %v1519, 127
    %v1521 = vlaneseq
    %v1522 = vshrl.u32 %v1521, 7
    %v1523 = vsub.s32 %v1520, %v1522
    %v1524 = vrot.slane %v1473, %v1523
    %v1525 = vadd.s32 %v1520, 4294967288
    %v1526 = vlaneseq
    %v1527 = vshrl.u32 %v1526, 7
    %v1528 = vsub.s32 %v1525, %v1527
    %v1529 = vrot.slane %v1476, %v1528
    %vm1530 = vcmask 130112
    %v1531 = vsel %vm1530, %v1529, %v1524
    %v1532 = vadd.s32 %v1520, 4294967280
    %v1533 = vlaneseq
    %v1534 = vshrl.u32 %v1533, 7
    %v1535 = vsub.s32 %v1532, %v1534
    %v1536 = vrot.slane %v1479, %v1535
    %vm1537 = vcmask 195712
    %v1538 = vsel %vm1537, %v1536, %v1531
    %v1539 = vadd.s32 %v1520, 4294967272
    %v1540 = vlaneseq
    %v1541 = vshrl.u32 %v1540, 7
    %v1542 = vsub.s32 %v1539, %v1541
    %v1543 = vrot.slane %v1482, %v1542
    %vm1544 = vcmask 261312
    %v1545 = vsel %vm1544, %v1543, %v1538
    %v1546 = vadd.s32 %v1520, 4294967264
    %v1547 = vlaneseq
    %v1548 = vshrl.u32 %v1547, 7
    %v1549 = vsub.s32 %v1546, %v1548
    %v1550 = vrot.slane %v1485, %v1549
    %vm1551 = vcmask 326912
    %v1552 = vsel %vm1551, %v1550, %v1545
    %v1553 = vadd.s32 %v1520, 4294967256
    %v1554 = vlaneseq
    %v1555 = vshrl.u32 %v1554, 7
    %v1556 = vsub.s32 %v1553, %v1555
    %v1557 = vrot.slane %v1488, %v1556
    %vm1558 = vcmask 392512
    %v1559 = vsel %vm1558, %v1557, %v1552
    %v1560 = vadd.s32 %v1520, 4294967248
    %v1561 = vlaneseq
    %v1562 = vshrl.u32 %v1561, 7
    %v1563 = vsub.s32 %v1560, %v1562
    %v1564 = vrot.slane %v1491, %v1563
    %vm1565 = vcmask 458112
    %v1566 = vsel %vm1565, %v1564, %v1559
    %v1567 = vadd.s32 %v1520, 4294967240
    %v1568 = vlaneseq
    %v1569 = vshrl.u32 %v1568, 7
    %v1570 = vsub.s32 %v1567, %v1569
    %v1571 = vrot.slane %v1494, %v1570
    %vm1572 = vcmask 523712
    %v1573 = vsel %vm1572, %v1571, %v1566
    %v1574 = vadd.s32 %v1520, 4294967232
    %v1575 = vlaneseq
    %v1576 = vshrl.u32 %v1575, 7
    %v1577 = vsub.s32 %v1574, %v1576
    %v1578 = vrot.slane %v1497, %v1577
    %vm1579 = vcmask 589312
    %v1580 = vsel %vm1579, %v1578, %v1573
    %v1581 = vadd.s32 %v1520, 4294967224
    %v1582 = vlaneseq
    %v1583 = vshrl.u32 %v1582, 7
    %v1584 = vsub.s32 %v1581, %v1583
    %v1585 = vrot.slane %v1500, %v1584
    %vm1586 = vcmask 654912
    %v1587 = vsel %vm1586, %v1585, %v1580
    %v1588 = vadd.s32 %v1520, 4294967216
    %v1589 = vlaneseq
    %v1590 = vshrl.u32 %v1589, 7
    %v1591 = vsub.s32 %v1588, %v1590
    %v1592 = vrot.slane %v1503, %v1591
    %vm1593 = vcmask 720512
    %v1594 = vsel %vm1593, %v1592, %v1587
    %v1595 = vadd.s32 %v1520, 4294967208
    %v1596 = vlaneseq
    %v1597 = vshrl.u32 %v1596, 7
    %v1598 = vsub.s32 %v1595, %v1597
    %v1599 = vrot.slane %v1506, %v1598
    %vm1600 = vcmask 786112
    %v1601 = vsel %vm1600, %v1599, %v1594
    %v1602 = vadd.s32 %v1520, 4294967200
    %v1603 = vlaneseq
    %v1604 = vshrl.u32 %v1603, 7
    %v1605 = vsub.s32 %v1602, %v1604
    %v1606 = vrot.slane %v1509, %v1605
    %vm1607 = vcmask 851712
    %v1608 = vsel %vm1607, %v1606, %v1601
    %v1609 = vadd.s32 %v1520, 4294967192
    %v1610 = vlaneseq
    %v1611 = vshrl.u32 %v1610, 7
    %v1612 = vsub.s32 %v1609, %v1611
    %v1613 = vrot.slane %v1512, %v1612
    %vm1614 = vcmask 917312
    %v1615 = vsel %vm1614, %v1613, %v1608
    %v1616 = vadd.s32 %v1520, 4294967184
    %v1617 = vlaneseq
    %v1618 = vshrl.u32 %v1617, 7
    %v1619 = vsub.s32 %v1616, %v1618
    %v1620 = vrot.slane %v1515, %v1619
    %vm1621 = vcmask 982912
    %v1622 = vsel %vm1621, %v1620, %v1615
    %v1623 = vadd.s32 %v1520, 4294967176
    %v1624 = vlaneseq
    %v1625 = vshrl.u32 %v1624, 7
    %v1626 = vsub.s32 %v1623, %v1625
    %v1627 = vrot.slane %v1518, %v1626
    %vm1628 = vcmask 1048512
    %v1629 = vsel %vm1628, %v1627, %v1622
    %v1631 = vunpack.c.l.s4 1966171168
    %v1632 = vunpack.c.0.s8 %v1631
    %v1633 = vlaneseq
    %v1634 = vshrl.u32 %v1633, 7
    %v1635 = vsub.s32 %v1632, %v1634
    %v1636 = vrot.slane %v1629, %v1635
    %v1638 = vunpack.c.l.s4 1966171168
    %v1639 = vunpack.c.0.s8 %v1638
    %v1640 = vlaneseq
    %v1641 = vshrl.u32 %v1640, 7
    %v1642 = vsub.s32 %v1639, %v1641
    %v1643 = vrot.slane %v1636, %v1642
    %v1645 = vadd.f32 %v158, %v1643
    %1646 = vst [vmem:[#allocation2] sm:$0x1] %v1645
    // Predicated region
    $region22: #{tpu_custom_call.1} parent=1 // pred_check
      %p1647 = pneg %p30
    $region23: #{tpu_custom_call.1} parent=1 // pred_check_branch
      %1649 = sbr.rel (%p1647) target = $region25
    $region24: #{tpu_custom_call.1} parent=1 // pred_region
      %v1650 = vld [vmem:[#allocation2] sm:$0x1]
      %s1651 = sld [smem:[#allocation3]]
      %v1652 = vstv %s1651
      %v1653 = vadd.f32 %v1650, %v1652
      %v1654 = vmul.f32 %v1653, 1.442695
      %v1655 = vpow.pop %v1654
      %v1656 = vadd.f32 %v1655, 1.0
      %v1657 = vrcp.pop %v1656
      %v1658 = vmul.f32 1.0, %v1657
      %1659 = vst [vmem:[#allocation7] sm:$0x1] %v1658
    $region25: #{tpu_custom_call.1} parent=1 // pred_fallthru
      _
    // Predicated region
    $region26: #{tpu_custom_call.1} parent=1 // pred_check
      _
    $region27: #{tpu_custom_call.1} parent=1 // pred_check_branch
      %1661 = sbr.rel (0) target = $region29
    $region28: #{tpu_custom_call.1} parent=1 // pred_region
      %s1663 = ssub.s32 16, 16
      %1664 = vsyncadd [#allocation6], %s1663
      %s1666 = sshll.u32 [#allocation7], 4
      %s1667 = int_to_ptr.vmem [resolvable:$true] %s1666
      %1669 = dma.vmem_to_hbm [thread:$0]  %s1667, 16, %s3, [#allocation6]
    $region29: #{tpu_custom_call.1} parent=1 // pred_fallthru
      _
    // Predicated region
    $region30: #{tpu_custom_call.1} parent=1 // pred_check
      _
    $region31: #{tpu_custom_call.1} parent=1 // pred_check_branch
      %1671 = sbr.rel (0) target = $region33
    $region32: #{tpu_custom_call.1} parent=1 // pred_region
      %1672 = dma.done [#allocation6], 16
    $region33: #{tpu_custom_call.1} parent=1 // pred_fallthru
      _
    %1673 = vsyncpa [#allocation5], 1
    %1674 = vsyncpa [#allocation6], 1

</llo_original>
